<compile_context>
chip_gen: v5e
topology: v5e:2x2
jax: 0.10.0
libtpu: 0.0.40
codegen_flags: <defaults>
</compile_context>

<pallas_src>
import jax
import jax.numpy as jnp
from jax.experimental import pallas as pl
from jax.experimental.pallas import tpu as pltpu


def _round_up(v: int, m: int) -> int:
    return (v + m - 1) // m * m


# --------------------------------------------------------------------------
# Kernel: one lane-dense matmul over all heads, bias folded into W.
# --------------------------------------------------------------------------
def _decoder_matmul_kernel(x_ref, w_ref, o_ref):
    # x_ref : (B_pad, D_in_pad)  bf16  -- same block every grid step
    # w_ref : (D_in_pad, tn)     bf16  -- N-tile j of the flattened weight
    #                                     (row D_in holds the bias)
    # o_ref : (B_pad, tn)        f32
    o_ref[...] = jnp.dot(x_ref[...], w_ref[...],
                         preferred_element_type=jnp.float32)


# --------------------------------------------------------------------------
# One-time parameter preparation (hoisted out of the forward path).
# --------------------------------------------------------------------------
def prepare_linear_params(W, b):
    """W: (T, D_in, D_out) f32, b: (T, D_out) f32 ->
       padded/flattened bf16 weight with bias folded into row D_in."""
    T, D_in, D_out = W.shape
    N = T * D_out
    D_in_pad = _round_up(D_in + 1, 128)     # +1 row reserved for the bias
    N_pad = _round_up(N, 128)               # pad the flattened N once

    W_flat = jnp.transpose(W, (1, 0, 2)).reshape(D_in, N)   # (D_in, T*D_out)
    b_flat = b.reshape(1, N)                                  # (1,    T*D_out)
    Wb = jnp.concatenate([W_flat, b_flat], axis=0)            # (D_in+1, N)

    W_pad = jnp.zeros((D_in_pad, N_pad), jnp.bfloat16)
    W_pad = W_pad.at[:D_in + 1, :N].set(Wb.astype(jnp.bfloat16))

    return {
        "W_flat": W_pad,          # (D_in_pad, N_pad) bf16, bias in row D_in
        "T": T, "D_in": D_in, "D_out": D_out, "N": N,
        "D_in_pad": D_in_pad, "N_pad": N_pad,
    }


# --------------------------------------------------------------------------
# Per-call linear heads (single Pallas matmul).
# --------------------------------------------------------------------------
def _run_linear_heads(x, lin):
    """x: (B, D_in) f32 -> (B, T, D_out) f32 using prepared params `lin`."""
    B, D_in = x.shape
    assert D_in == lin["D_in"]
    T, D_out, N = lin["T"], lin["D_out"], lin["N"]
    D_in_pad, N_pad = lin["D_in_pad"], lin["N_pad"]

    # bf16 packs 16 rows per vreg -> pad batch to 16 sublanes.
    B_pad = _round_up(max(B, 1), 16)

    x_pad = jnp.zeros((B_pad, D_in_pad), jnp.bfloat16)
    x_pad = x_pad.at[:B, :D_in].set(x.astype(jnp.bfloat16))
    x_pad = x_pad.at[:B, D_in].set(jnp.bfloat16(1.0))   # bias column (exact)

    # Tile selection: single grid step unless each weight tile is big enough
    # (>= 1 MiB) to amortize the per-step cost, and tn is a 256 multiple so
    # MXU column passes stay full on v6e/v7x.
    tn = N_pad
    half = N_pad // 2
    if half % 256 == 0 and D_in_pad * half * 2 >= (1 << 20):
        tn = half
    grid = (N_pad // tn,)

    out = pl.pallas_call(
        _decoder_matmul_kernel,
        out_shape=jax.ShapeDtypeStruct((B_pad, N_pad), jnp.float32),
        grid=grid,
        in_specs=[
            pl.BlockSpec((B_pad, D_in_pad), lambda j: (0, 0)),
            pl.BlockSpec((D_in_pad, tn), lambda j: (0, j)),
        ],
        out_specs=pl.BlockSpec((B_pad, tn), lambda j: (0, j)),
        compiler_params=pltpu.CompilerParams(
            dimension_semantics=("parallel",)),
    )(x_pad, lin["W_flat"])

    # (B_pad, N_pad) -> (B, T, D_out): slice padding away, then reshape.
    return out[:B, :N].reshape(B, T, D_out)


# --------------------------------------------------------------------------
# Full forward (matches GlobalDecoder.forward, eval mode).
# --------------------------------------------------------------------------
def global_decoder_forward(future, hidden, params, *, tau, d_model):
    emb_tables = params["emb_tables"]           # list of (n_i, d_embedding)
    feats = [tbl[future[:, :, i]] for i, tbl in enumerate(emb_tables)]
    emb_output_ = jnp.stack(feats, axis=2)      # (B, tau, K, d_emb)

    B = future.shape[0]
    emb_flat = emb_output_.reshape(B, -1)       # (B, tau*K*d_emb)

    assert hidden.shape[-1] == d_model          # mirrors the module's assert
    h_last = hidden[-1]                         # (B, d_hidden)
    x = jnp.concatenate([h_last, emb_flat], axis=-1)   # (B, D_in)

    # (B, T, (tau+1)*d_model), all heads in one Pallas matmul.
    global_context = _run_linear_heads(x, params["lin"])

    emb_seq = emb_output_.reshape(B, tau, -1)   # (B, tau, K*d_emb)
    return emb_seq, global_context


# --------------------------------------------------------------------------
# Parameter init (raw torch-equivalent params + one-time prepared weights).
# --------------------------------------------------------------------------
def init_params(key, *, d_hidden, d_embedding, n_embedding, d_model, tau,
                num_targets):
    K = len(n_embedding)
    D_in = d_hidden + tau * d_embedding * K
    D_out = (tau + 1) * d_model
    keys = jax.random.split(key, K + 2)

    emb_tables = [
        jax.random.normal(keys[i], (n, d_embedding), jnp.float32)
        for i, n in enumerate(n_embedding)
    ]
    bound = 1.0 / jnp.sqrt(D_in)
    # Stored pre-transposed vs. torch Linear: (T, D_in, D_out) so y = x @ W[t].
    W = jax.random.uniform(keys[K], (num_targets, D_in, D_out),
                           jnp.float32, -bound, bound)
    b = jax.random.uniform(keys[K + 1], (num_targets, D_out),
                           jnp.float32, -bound, bound)

    # Hoisted, one-time preprocessing of the linear heads.
    lin = prepare_linear_params(W, b)
    return {"emb_tables": emb_tables, "W": W, "b": b, "lin": lin}


if __name__ == "__main__":
    # Small config consistent with the module.
    d_model = 32
    d_hidden = d_model          # forward asserts d_hidden == d_model
    d_embedding = 4
    n_embedding = [10, 12]      # K = 2
    tau = 8
    num_targets = 2
    num_layers = 2
    batch = 4

    key = jax.random.PRNGKey(0)
    k_par, k_fut, k_hid = jax.random.split(key, 3)

    params = init_params(k_par, d_hidden=d_hidden, d_embedding=d_embedding,
                         n_embedding=n_embedding, d_model=d_model,
                         tau=tau, num_targets=num_targets)
    jax.block_until_ready(params["lin"]["W_flat"])   # one-time prep done here

    # future: integer covariate indices, shape (batch, tau, K)
    cols = [
        jax.random.randint(jax.random.fold_in(k_fut, i), (batch, tau, 1), 0, n)
        for i, n in enumerate(n_embedding)
    ]
    future = jnp.concatenate(cols, axis=-1).astype(jnp.int32)

    hidden = jax.random.normal(k_hid, (num_layers, batch, d_hidden),
                               jnp.float32)

    emb_seq, global_context = global_decoder_forward(
        future, hidden, params, tau=tau, d_model=d_model)
    jax.block_until_ready((emb_seq, global_context))

    # Pure-JAX reference check (f32 reference; bf16 MXU inputs + bf16-rounded
    # folded bias in the kernel -> loose tolerance).
    K = len(n_embedding)
    feats = [params["emb_tables"][i][future[:, :, i]] for i in range(K)]
    emb_flat_ref = jnp.stack(feats, axis=2).reshape(batch, -1)
    x_ref = jnp.concatenate([hidden[-1], emb_flat_ref], axis=-1)
    gc_ref = jnp.einsum("bi,tio->bto", x_ref, params["W"]) + params["b"][None]

    assert emb_seq.shape == (batch, tau, K * d_embedding)
    assert global_context.shape == (batch, num_targets, (tau + 1) * d_model)
    assert jnp.allclose(global_context, gc_ref, atol=5e-2, rtol=5e-2), (
        float(jnp.max(jnp.abs(global_context - gc_ref))))

    print("KERNEL_OK")
</pallas_src>

<mosaic_0001>
module attributes {stable_mosaic.version = 11 : i64} {
  func.func @_decoder_matmul_kernel(%arg0: i32, %arg1: memref<16x128xbf16, #tpu.memory_space<vmem>>, %arg2: memref<128x640xbf16, #tpu.memory_space<vmem>>, %arg3: memref<16x640xf32, #tpu.memory_space<vmem>>) attributes {dimension_semantics = [#tpu.dimension_semantics<parallel>], iteration_bounds = array<i64: 1>, scalar_prefetch = 0 : i64, scratch_operands = 0 : i64, tpu.core_type = #tpu.core_type<tc>, window_params = [{pipeline_mode = #tpu.pipeline_mode<synchronous>, transform_indices = @transform_0, window_bounds = array<i64: 16, 128>}, {transform_indices = @transform_1, window_bounds = array<i64: 128, 640>}, {transform_indices = @transform_2, window_bounds = array<i64: 16, 640>}]} {
    %c0 = arith.constant 0 : index
    %c0_0 = arith.constant 0 : index
    %0 = vector.load %arg1[%c0, %c0_0] : memref<16x128xbf16, #tpu.memory_space<vmem>>, vector<16x128xbf16>
    %c0_1 = arith.constant 0 : index
    %c0_2 = arith.constant 0 : index
    %1 = vector.load %arg2[%c0_1, %c0_2] : memref<128x640xbf16, #tpu.memory_space<vmem>>, vector<128x640xbf16>
    %cst = arith.constant dense<0.000000e+00> : vector<16x640xf32>
    %2 = tpu.matmul %0, %1, %cst {dimension_numbers = #tpu.dot_dimension_numbers<[1], [0], [0], [1], [0, 0, 1, 1], [], []>} : vector<16x128xbf16>, vector<128x640xbf16>, vector<16x640xf32> -> vector<16x640xf32>
    %c0_3 = arith.constant 0 : index
    %c0_4 = arith.constant 0 : index
    %3 = vector.load %arg3[%c0_3, %c0_4] : memref<16x640xf32, #tpu.memory_space<vmem>>, vector<16x640xf32>
    tpu.vector_store %arg3[%c0_3, %c0_4], %2 {strides = array<i32>} : memref<16x640xf32, #tpu.memory_space<vmem>>, vector<16x640xf32>,
    return
  }
  func.func @transform_0(%arg0: i32) -> (i32, i32) {
    %c0_i32 = arith.constant 0 : i32
    %c0_i32_0 = arith.constant 0 : i32
    %c0_i32_1 = arith.constant 0 : i32
    return %c0_i32, %c0_i32_0 : i32, i32
  }
  func.func @transform_1(%arg0: i32) -> (i32, i32) {
    %c0_i32 = arith.constant 0 : i32
    %c0_i32_0 = arith.constant 0 : i32
    return %c0_i32, %arg0 : i32, i32
  }
  func.func @transform_2(%arg0: i32) -> (i32, i32) {
    %c0_i32 = arith.constant 0 : i32
    %c0_i32_0 = arith.constant 0 : i32
    return %c0_i32, %arg0 : i32, i32
  }
}

</mosaic_0001>

<llo_original>
// kernel: tpu_custom_call.1
$region0: #{tpu_custom_call.1}
  #allocation0 [shape = 'u32[]', space=smem, size = 0x4, offset = 0x4, fixed_abs, tag = 'smem constant byte address 0x4 - core index']
  #allocation1 [shape = 'u32[72,128]{1,0:T(1,128)}', space=vmem, size = 0x9000, scoped, tag = 'internal scratch']
  %s0 = inlined_call_operand.hbm [shape: bf16[16,128], index: 0, kind: input, shape index: {}]
  %s1 = inlined_call_operand.hbm [shape: bf16[128,640], index: 1, kind: input, shape index: {}]
  %s2 = inlined_call_operand.hbm [shape: f32[16,640], index: 2, kind: output, shape index: {}]
  %s3 = sld [smem:[#allocation0]]
  $region26: #{tpu_custom_call.1} parent=0
    _
  %s5 = ssub.s32 1, %s3
  %s6 = scalar_select 0, %s5, %s3
  $region1: #{tpu_custom_call.1} parent=0
    #allocation2 [shape = 'u8[4096]{0}', space=vmem, size = 0x1000, scoped, tag = 'input window, operand 0, single buffered']
    #allocation3 [shape = 's32[1]{0}', space=sflag, size = 0x4, scoped, tag = 'scoped memory for tpu_custom_call.1']
    #allocation4 [shape = 's32[1]{0}', space=sflag, size = 0x4, scoped, tag = 'scoped memory for tpu_custom_call.1']
    #allocation5 [shape = 'u8[163840]{0}', space=vmem, size = 0x28000, scoped, tag = 'input window, operand 1, single buffered']
    #allocation6 [shape = 's32[1]{0}', space=sflag, size = 0x4, scoped, tag = 'scoped memory for tpu_custom_call.1']
    #allocation7 [shape = 'u8[40960]{0}', space=vmem, size = 0xa000, scoped, tag = 'output window, operand 0, single buffered']
    %7 = vsyncpa [#allocation3], 0
    %8 = vsyncpa [#allocation6], 0
    %9 = vsyncpa [#allocation4], 0
    // Predicated region
    $region2: #{tpu_custom_call.1} parent=1 // pred_check
      _
    $region3: #{tpu_custom_call.1} parent=1 // pred_check_branch
      %11 = sbr.rel (0) target = $region5
    $region4: #{tpu_custom_call.1} parent=1 // pred_region
      %13 = vsyncadd [#allocation3], 0
      %s14 = sshll.u32 %s0, 4
      %s15 = int_to_ptr.hbm [resolvable:$true] %s14
      %s16 = sshll.u32 [#allocation2], 4
      %s17 = int_to_ptr.vmem [resolvable:$true] %s16
      %22 = dma.hbm_to_vmem [thread:$0]  %s15, 128, %s17, [#allocation3], 64, 64, 4
    $region5: #{tpu_custom_call.1} parent=1 // pred_fallthru
      _
    // Predicated region
    $region6: #{tpu_custom_call.1} parent=1 // pred_check
      _
    $region7: #{tpu_custom_call.1} parent=1 // pred_check_branch
      %24 = sbr.rel (0) target = $region9
    $region8: #{tpu_custom_call.1} parent=1 // pred_region
      %26 = vsyncadd [#allocation6], 0
      %s27 = sshll.u32 %s1, 4
      %s28 = int_to_ptr.hbm [resolvable:$true] %s27
      %s29 = sshll.u32 [#allocation5], 4
      %s30 = int_to_ptr.vmem [resolvable:$true] %s29
      %35 = dma.hbm_to_vmem [thread:$0]  %s28, 5120, %s30, [#allocation6], 320, 320, 20
    $region9: #{tpu_custom_call.1} parent=1 // pred_fallthru
      _
    // Predicated region
    $region10: #{tpu_custom_call.1} parent=1 // pred_check
      _
    $region11: #{tpu_custom_call.1} parent=1 // pred_check_branch
      %37 = sbr.rel (0) target = $region13
    $region12: #{tpu_custom_call.1} parent=1 // pred_region
      %39 = dma.done [#allocation3], 128
    $region13: #{tpu_custom_call.1} parent=1 // pred_fallthru
      _
    // Predicated region
    $region14: #{tpu_custom_call.1} parent=1 // pred_check
      _
    $region15: #{tpu_custom_call.1} parent=1 // pred_check_branch
      %41 = sbr.rel (0) target = $region17
    $region16: #{tpu_custom_call.1} parent=1 // pred_region
      %43 = dma.done [#allocation6], 5120
    $region17: #{tpu_custom_call.1} parent=1 // pred_fallthru
      _
    %v44 = vld [vmem:[#allocation2] sm:$0xf]
    %v45 = vld [vmem:[#allocation2 + $0x4] sm:$0xf]
    %v46 = vld [vmem:[#allocation5] sm:$0xff]
    %v47 = vld [vmem:[#allocation5 + $0x8] sm:$0xff]
    %v48 = vld [vmem:[#allocation5 + $0x10] sm:$0xf]
    %v49 = vld [vmem:[#allocation5 + $0x14] sm:$0xff]
    %v50 = vld [vmem:[#allocation5 + $0x1c] sm:$0xff]
    %v51 = vld [vmem:[#allocation5 + $0x24] sm:$0xf]
    %v52 = vld [vmem:[#allocation5 + $0x28] sm:$0xff]
    %v53 = vld [vmem:[#allocation5 + $0x30] sm:$0xff]
    %v54 = vld [vmem:[#allocation5 + $0x38] sm:$0xf]
    %v55 = vld [vmem:[#allocation5 + $0x3c] sm:$0xff]
    %v56 = vld [vmem:[#allocation5 + $0x44] sm:$0xff]
    %v57 = vld [vmem:[#allocation5 + $0x4c] sm:$0xf]
    %v58 = vld [vmem:[#allocation5 + $0x50] sm:$0xff]
    %v59 = vld [vmem:[#allocation5 + $0x58] sm:$0xff]
    %v60 = vld [vmem:[#allocation5 + $0x60] sm:$0xf]
    %v61 = vld [vmem:[#allocation5 + $0x64] sm:$0xff]
    %v62 = vld [vmem:[#allocation5 + $0x6c] sm:$0xff]
    %v63 = vld [vmem:[#allocation5 + $0x74] sm:$0xf]
    %v64 = vld [vmem:[#allocation5 + $0x78] sm:$0xff]
    %v65 = vld [vmem:[#allocation5 + $0x80] sm:$0xff]
    %v66 = vld [vmem:[#allocation5 + $0x88] sm:$0xf]
    %v67 = vld [vmem:[#allocation5 + $0x8c] sm:$0xff]
    %v68 = vld [vmem:[#allocation5 + $0x94] sm:$0xff]
    %v69 = vld [vmem:[#allocation5 + $0x9c] sm:$0xf]
    %v70 = vld [vmem:[#allocation5 + $0xa0] sm:$0xff]
    %v71 = vld [vmem:[#allocation5 + $0xa8] sm:$0xff]
    %v72 = vld [vmem:[#allocation5 + $0xb0] sm:$0xf]
    %v73 = vld [vmem:[#allocation5 + $0xb4] sm:$0xff]
    %v74 = vld [vmem:[#allocation5 + $0xbc] sm:$0xff]
    %v75 = vld [vmem:[#allocation5 + $0xc4] sm:$0xf]
    %v76 = vld [vmem:[#allocation5 + $0xc8] sm:$0xff]
    %v77 = vld [vmem:[#allocation5 + $0xd0] sm:$0xff]
    %v78 = vld [vmem:[#allocation5 + $0xd8] sm:$0xf]
    %v79 = vld [vmem:[#allocation5 + $0xdc] sm:$0xff]
    %v80 = vld [vmem:[#allocation5 + $0xe4] sm:$0xff]
    %v81 = vld [vmem:[#allocation5 + $0xec] sm:$0xf]
    %v82 = vld [vmem:[#allocation5 + $0xf0] sm:$0xff]
    %v83 = vld [vmem:[#allocation5 + $0xf8] sm:$0xff]
    %v84 = vld [vmem:[#allocation5 + $0x100] sm:$0xf]
    %v85 = vld [vmem:[#allocation5 + $0x104] sm:$0xff]
    %v86 = vld [vmem:[#allocation5 + $0x10c] sm:$0xff]
    %v87 = vld [vmem:[#allocation5 + $0x114] sm:$0xf]
    %v88 = vld [vmem:[#allocation5 + $0x118] sm:$0xff]
    %v89 = vld [vmem:[#allocation5 + $0x120] sm:$0xff]
    %v90 = vld [vmem:[#allocation5 + $0x128] sm:$0xf]
    %v91 = vld [vmem:[#allocation5 + $0x12c] sm:$0xff]
    %v92 = vld [vmem:[#allocation5 + $0x134] sm:$0xff]
    %v93 = vld [vmem:[#allocation5 + $0x13c] sm:$0xf]
    %v96 = vunpack.c.l.b16 %v44
    %v97 = vunpack.c.l.b16 %v45
    %v98 = vpack.c.b16 %v97, %v96
    %v148 = vunpack.c.l.b16 %v46
    %v149 = vunpack.c.h.b16 %v46
    %v150 = vunpack.c.l.b16 %v47
    %v151 = vunpack.c.h.b16 %v47
    %v152 = vunpack.c.l.b16 %v48
    %v153 = vunpack.c.l.b16 %v49
    %v154 = vunpack.c.h.b16 %v49
    %v155 = vunpack.c.l.b16 %v50
    %v156 = vunpack.c.h.b16 %v50
    %v157 = vunpack.c.l.b16 %v51
    %v158 = vunpack.c.l.b16 %v52
    %v159 = vunpack.c.h.b16 %v52
    %v160 = vunpack.c.l.b16 %v53
    %v161 = vunpack.c.h.b16 %v53
    %v162 = vunpack.c.l.b16 %v54
    %v163 = vunpack.c.l.b16 %v55
    %v164 = vunpack.c.h.b16 %v55
    %v165 = vunpack.c.l.b16 %v56
    %v166 = vunpack.c.h.b16 %v56
    %v167 = vunpack.c.l.b16 %v57
    %v168 = vunpack.c.l.b16 %v58
    %v169 = vunpack.c.h.b16 %v58
    %v170 = vunpack.c.l.b16 %v59
    %v171 = vunpack.c.h.b16 %v59
    %v172 = vunpack.c.l.b16 %v60
    %v173 = vunpack.c.l.b16 %v61
    %v174 = vunpack.c.h.b16 %v61
    %v175 = vunpack.c.l.b16 %v62
    %v176 = vunpack.c.h.b16 %v62
    %v177 = vunpack.c.l.b16 %v63
    %v178 = vunpack.c.l.b16 %v64
    %v179 = vunpack.c.h.b16 %v64
    %v180 = vunpack.c.l.b16 %v65
    %v181 = vunpack.c.h.b16 %v65
    %v182 = vunpack.c.l.b16 %v66
    %v183 = vunpack.c.l.b16 %v67
    %v184 = vunpack.c.h.b16 %v67
    %v185 = vunpack.c.l.b16 %v68
    %v186 = vunpack.c.h.b16 %v68
    %v187 = vunpack.c.l.b16 %v69
    %v188 = vunpack.c.l.b16 %v70
    %v189 = vunpack.c.h.b16 %v70
    %v190 = vunpack.c.l.b16 %v71
    %v191 = vunpack.c.h.b16 %v71
    %v192 = vunpack.c.l.b16 %v72
    %v193 = vunpack.c.l.b16 %v73
    %v194 = vunpack.c.h.b16 %v73
    %v195 = vunpack.c.l.b16 %v74
    %v196 = vunpack.c.h.b16 %v74
    %v197 = vunpack.c.l.b16 %v75
    %v198 = vunpack.c.l.b16 %v76
    %v199 = vunpack.c.h.b16 %v76
    %v200 = vunpack.c.l.b16 %v77
    %v201 = vunpack.c.h.b16 %v77
    %v202 = vunpack.c.l.b16 %v78
    %v203 = vunpack.c.l.b16 %v79
    %v204 = vunpack.c.h.b16 %v79
    %v205 = vunpack.c.l.b16 %v80
    %v206 = vunpack.c.h.b16 %v80
    %v207 = vunpack.c.l.b16 %v81
    %v208 = vunpack.c.l.b16 %v82
    %v209 = vunpack.c.h.b16 %v82
    %v210 = vunpack.c.l.b16 %v83
    %v211 = vunpack.c.h.b16 %v83
    %v212 = vunpack.c.l.b16 %v84
    %v213 = vunpack.c.l.b16 %v85
    %v214 = vunpack.c.h.b16 %v85
    %v215 = vunpack.c.l.b16 %v86
    %v216 = vunpack.c.h.b16 %v86
    %v217 = vunpack.c.l.b16 %v87
    %v218 = vunpack.c.l.b16 %v88
    %v219 = vunpack.c.h.b16 %v88
    %v220 = vunpack.c.l.b16 %v89
    %v221 = vunpack.c.h.b16 %v89
    %v222 = vunpack.c.l.b16 %v90
    %v223 = vunpack.c.l.b16 %v91
    %v224 = vunpack.c.h.b16 %v91
    %v225 = vunpack.c.l.b16 %v92
    %v226 = vunpack.c.h.b16 %v92
    %v227 = vunpack.c.l.b16 %v93
    %v228 = vpack.c.b16 %v153, %v148
    %v229 = vpack.c.b16 %v154, %v149
    %v230 = vpack.c.b16 %v155, %v150
    %v231 = vpack.c.b16 %v156, %v151
    %v232 = vpack.c.b16 %v157, %v152
    %v233 = vpack.c.b16 %v163, %v158
    %v234 = vpack.c.b16 %v164, %v159
    %v235 = vpack.c.b16 %v165, %v160
    %v236 = vpack.c.b16 %v166, %v161
    %v237 = vpack.c.b16 %v167, %v162
    %v238 = vpack.c.b16 %v173, %v168
    %v239 = vpack.c.b16 %v174, %v169
    %v240 = vpack.c.b16 %v175, %v170
    %v241 = vpack.c.b16 %v176, %v171
    %v242 = vpack.c.b16 %v177, %v172
    %v243 = vpack.c.b16 %v183, %v178
    %v244 = vpack.c.b16 %v184, %v179
    %v245 = vpack.c.b16 %v185, %v180
    %v246 = vpack.c.b16 %v186, %v181
    %v247 = vpack.c.b16 %v187, %v182
    %v248 = vpack.c.b16 %v193, %v188
    %v249 = vpack.c.b16 %v194, %v189
    %v250 = vpack.c.b16 %v195, %v190
    %v251 = vpack.c.b16 %v196, %v191
    %v252 = vpack.c.b16 %v197, %v192
    %v253 = vpack.c.b16 %v203, %v198
    %v254 = vpack.c.b16 %v204, %v199
    %v255 = vpack.c.b16 %v205, %v200
    %v256 = vpack.c.b16 %v206, %v201
    %v257 = vpack.c.b16 %v207, %v202
    %v258 = vpack.c.b16 %v213, %v208
    %v259 = vpack.c.b16 %v214, %v209
    %v260 = vpack.c.b16 %v215, %v210
    %v261 = vpack.c.b16 %v216, %v211
    %v262 = vpack.c.b16 %v217, %v212
    %v263 = vpack.c.b16 %v223, %v218
    %v264 = vpack.c.b16 %v224, %v219
    %v265 = vpack.c.b16 %v225, %v220
    %v266 = vpack.c.b16 %v226, %v221
    %v267 = vpack.c.b16 %v227, %v222
    %308 = vmatpush.bf16.msra.mxu0 %v263
    %309 = vmatpush.bf16.msra.mxu0 %v258
    %310 = vmatpush.bf16.msra.mxu0 %v253
    %311 = vmatpush.bf16.msra.mxu0 %v248
    %312 = vmatpush.bf16.msra.mxu0 %v243
    %313 = vmatpush.bf16.msra.mxu0 %v238
    %314 = vmatpush.bf16.msra.mxu0 %v233
    %315 = vmatpush.bf16.msra.mxu0 %v228
    %316 = vmatmul.bf16.gmra.mxu0 %v98
    %v317 = vpop.f32.mrf.mxu0
    %v318 = vadd.f32 0.0, %v317
    %v319 = vpop.f32.mrf.mxu0
    %v320 = vadd.f32 0.0, %v319
    %321 = vdwg.mxu0
    %322 = vmatpush.bf16.msra.mxu0 %v264
    %323 = vmatpush.bf16.msra.mxu0 %v259
    %324 = vmatpush.bf16.msra.mxu0 %v254
    %325 = vmatpush.bf16.msra.mxu0 %v249
    %326 = vmatpush.bf16.msra.mxu0 %v244
    %327 = vmatpush.bf16.msra.mxu0 %v239
    %328 = vmatpush.bf16.msra.mxu0 %v234
    %329 = vmatpush.bf16.msra.mxu0 %v229
    %330 = vmatmul.bf16.gmra.mxu0 %v98
    %v331 = vpop.f32.mrf.mxu0
    %v332 = vadd.f32 0.0, %v331
    %v333 = vpop.f32.mrf.mxu0
    %v334 = vadd.f32 0.0, %v333
    %335 = vdwg.mxu0
    %336 = vmatpush.bf16.msra.mxu0 %v265
    %337 = vmatpush.bf16.msra.mxu0 %v260
    %338 = vmatpush.bf16.msra.mxu0 %v255
    %339 = vmatpush.bf16.msra.mxu0 %v250
    %340 = vmatpush.bf16.msra.mxu0 %v245
    %341 = vmatpush.bf16.msra.mxu0 %v240
    %342 = vmatpush.bf16.msra.mxu0 %v235
    %343 = vmatpush.bf16.msra.mxu0 %v230
    %344 = vmatmul.bf16.gmra.mxu0 %v98
    %v345 = vpop.f32.mrf.mxu0
    %v346 = vadd.f32 0.0, %v345
    %v347 = vpop.f32.mrf.mxu0
    %v348 = vadd.f32 0.0, %v347
    %349 = vdwg.mxu0
    %350 = vmatpush.bf16.msra.mxu0 %v266
    %351 = vmatpush.bf16.msra.mxu0 %v261
    %352 = vmatpush.bf16.msra.mxu0 %v256
    %353 = vmatpush.bf16.msra.mxu0 %v251
    %354 = vmatpush.bf16.msra.mxu0 %v246
    %355 = vmatpush.bf16.msra.mxu0 %v241
    %356 = vmatpush.bf16.msra.mxu0 %v236
    %357 = vmatpush.bf16.msra.mxu0 %v231
    %358 = vmatmul.bf16.gmra.mxu0 %v98
    %v359 = vpop.f32.mrf.mxu0
    %v360 = vadd.f32 0.0, %v359
    %v361 = vpop.f32.mrf.mxu0
    %v362 = vadd.f32 0.0, %v361
    %363 = vdwg.mxu0
    %364 = vmatpush.bf16.msra.mxu0 %v267
    %365 = vmatpush.bf16.msra.mxu0 %v262
    %366 = vmatpush.bf16.msra.mxu0 %v257
    %367 = vmatpush.bf16.msra.mxu0 %v252
    %368 = vmatpush.bf16.msra.mxu0 %v247
    %369 = vmatpush.bf16.msra.mxu0 %v242
    %370 = vmatpush.bf16.msra.mxu0 %v237
    %371 = vmatpush.bf16.msra.mxu0 %v232
    %372 = vmatmul.bf16.gmra.mxu0 %v98
    %v373 = vpop.f32.mrf.mxu0
    %v374 = vadd.f32 0.0, %v373
    %v375 = vpop.f32.mrf.mxu0
    %v376 = vadd.f32 0.0, %v375
    %377 = vdwg.mxu0
    %378 = vst [vmem:[#allocation7] sm:$0xff] %v318
    %379 = vst [vmem:[#allocation7 + $0x8] sm:$0xff] %v332
    %380 = vst [vmem:[#allocation7 + $0x10] sm:$0xff] %v346
    %381 = vst [vmem:[#allocation7 + $0x18] sm:$0xff] %v360
    %382 = vst [vmem:[#allocation7 + $0x20] sm:$0xff] %v374
    %383 = vst [vmem:[#allocation7 + $0x28] sm:$0xff] %v320
    %384 = vst [vmem:[#allocation7 + $0x30] sm:$0xff] %v334
    %385 = vst [vmem:[#allocation7 + $0x38] sm:$0xff] %v348
    %386 = vst [vmem:[#allocation7 + $0x40] sm:$0xff] %v362
    %387 = vst [vmem:[#allocation7 + $0x48] sm:$0xff] %v376
    // Predicated region
    $region18: #{tpu_custom_call.1} parent=1 // pred_check
      _
    $region19: #{tpu_custom_call.1} parent=1 // pred_check_branch
      %389 = sbr.rel (0) target = $region21
    $region20: #{tpu_custom_call.1} parent=1 // pred_region
      %391 = vsyncadd [#allocation4], 0
      %s392 = sshll.u32 [#allocation7], 4
      %s393 = int_to_ptr.vmem [resolvable:$true] %s392
      %s394 = sshll.u32 %s2, 4
      %s395 = int_to_ptr.hbm [resolvable:$true] %s394
      %400 = dma.vmem_to_hbm [thread:$0]  %s393, 1280, %s395, [#allocation4], 640, 640, 40
    $region21: #{tpu_custom_call.1} parent=1 // pred_fallthru
      _
    // Predicated region
    $region22: #{tpu_custom_call.1} parent=1 // pred_check
      _
    $region23: #{tpu_custom_call.1} parent=1 // pred_check_branch
      %402 = sbr.rel (0) target = $region25
    $region24: #{tpu_custom_call.1} parent=1 // pred_region
      %404 = dma.done [#allocation4], 1280
    $region25: #{tpu_custom_call.1} parent=1 // pred_fallthru
      _
    %405 = vsyncpa [#allocation3], 1
    %406 = vsyncpa [#allocation6], 1
    %407 = vsyncpa [#allocation4], 1

</llo_original>
